<compile_context>
chip_gen: v5e
topology: v5e:2x2
jax: 0.10.0
libtpu: 0.0.40
codegen_flags: <defaults>
</compile_context>

<pallas_src>
import jax
import jax.numpy as jnp
from jax.experimental import pallas as pl
from jax.experimental.pallas import tpu as pltpu


def _make_conv1x1_kernel(N, C_in, C_out, k):
    """Fully-unrolled per-pixel channel mix.

    x_ref: (N*C_in*k, 128)  f32 VMEM  -- free reshape of NCHW, k = H*W // 128
    w_ref: (C_out*C_in,)    f32 SMEM  -- row-major [co, ci] scalars
    b_ref: (C_out,)         f32 SMEM
    o_ref: (N*C_out*k, 128) f32 VMEM
    """
    def kernel(x_ref, w_ref, b_ref, o_ref):
        x = x_ref[...]  # one unmasked full-block load (full (8,128) tiles)
        rows = []
        for n in range(N):
            for co in range(C_out):
                x0 = x[(n * C_in + 0) * k:(n * C_in + 1) * k, :]
                # bias folded into the first multiply-add's initialization
                acc = x0 * w_ref[co * C_in + 0] + b_ref[co]
                for ci in range(1, C_in):
                    xi = x[(n * C_in + ci) * k:(n * C_in + ci + 1) * k, :]
                    acc = acc + xi * w_ref[co * C_in + ci]
                rows.append(acc)
        # single lane-dense, unmasked full-block store
        o_ref[...] = jnp.concatenate(rows, axis=0)

    return kernel


def conv2d_dil_1x1(x, weight, bias):
    """x: (N, C_in, H, W) f32; weight: (C_out, C_in, 1, 1); bias: (C_out,)."""
    N, C_in, H, W = x.shape
    C_out, C_in_w, kh, kw = weight.shape
    # Guard the "dilation is a no-op" assumption.
    assert (kh, kw) == (1, 1), "kernel assumes a 1x1 conv (dilation no-op)"
    assert C_in_w == C_in

    HW = H * W
    # Pack into full (8,128) vreg tiles; for H=W=16, HW=256 -> k=2.
    assert HW % 128 == 0, "spatial size must pack into 128-wide lane tiles"
    k = HW // 128

    # FREE reshapes of contiguous NCHW (no transposes, no data movement):
    x_packed = x.reshape(N * C_in * k, 128)
    w_flat = weight.reshape(C_out * C_in)

    flops = 2 * N * HW * C_in * C_out + N * HW * C_out
    bytes_accessed = 4 * (N * C_in * HW + N * C_out * HW + C_out * C_in + C_out)

    out_packed = pl.pallas_call(
        _make_conv1x1_kernel(N, C_in, C_out, k),
        out_shape=jax.ShapeDtypeStruct((N * C_out * k, 128), x.dtype),
        in_specs=[
            pl.BlockSpec(memory_space=pltpu.MemorySpace.VMEM),   # x slab
            pl.BlockSpec(memory_space=pltpu.MemorySpace.SMEM),   # weights (scalars)
            pl.BlockSpec(memory_space=pltpu.MemorySpace.SMEM),   # bias (scalars)
        ],
        out_specs=pl.BlockSpec(memory_space=pltpu.MemorySpace.VMEM),
        cost_estimate=pl.CostEstimate(
            flops=flops, transcendentals=0, bytes_accessed=bytes_accessed),
    )(x_packed, w_flat, bias)

    # FREE reshape back to NCHW (row order matches (n, co, pixel)).
    return out_packed.reshape(N, C_out, H, W)


if __name__ == "__main__":
    key = jax.random.PRNGKey(0)
    kx, kw, kb = jax.random.split(key, 3)

    N, C_in, C_out, H, W = 2, 2, 2, 16, 16

    # Deterministic parameter init (PyTorch-style uniform(-1/sqrt(fan_in), ...))
    fan_in = C_in * 1 * 1
    bound = 1.0 / (fan_in ** 0.5)
    weight = jax.random.uniform(kw, (C_out, C_in, 1, 1), jnp.float32,
                                minval=-bound, maxval=bound)
    bias = jax.random.uniform(kb, (C_out,), jnp.float32,
                              minval=-bound, maxval=bound)

    x = jax.random.normal(kx, (N, C_in, H, W), jnp.float32)

    out = conv2d_dil_1x1(x, weight, bias)
    out = jax.block_until_ready(out)

    # Reference check against plain JAX (1x1 conv == channel matmul + bias)
    ref = jnp.einsum("oc,nchw->nohw", weight.reshape(C_out, C_in), x) \
        + bias.reshape(1, C_out, 1, 1)
    assert out.shape == (N, C_out, H, W)
    assert jnp.allclose(out, ref, atol=1e-5, rtol=1e-5)

    print("KERNEL_OK")
</pallas_src>

<mosaic_0001>
module attributes {stable_mosaic.version = 11 : i64} {
  func.func @kernel(%arg0: memref<8x128xf32, #tpu.memory_space<vmem>>, %arg1: memref<4xf32, #tpu.memory_space<smem>>, %arg2: memref<2xf32, #tpu.memory_space<smem>>, %arg3: memref<8x128xf32, #tpu.memory_space<vmem>>) attributes {dimension_semantics = [], scalar_prefetch = 0 : i64, scratch_operands = 0 : i64, tpu.core_type = #tpu.core_type<tc>} {
    %c0 = arith.constant 0 : index
    %c0_0 = arith.constant 0 : index
    %0 = vector.load %arg0[%c0, %c0_0] : memref<8x128xf32, #tpu.memory_space<vmem>>, vector<8x128xf32>
    %1 = vector.extract_strided_slice %0 {offsets = [0, 0], sizes = [2, 128], strides = [1, 1]} : vector<8x128xf32> to vector<2x128xf32>
    %c0_1 = arith.constant 0 : index
    %2 = memref.load %arg1[%c0_1] : memref<4xf32, #tpu.memory_space<smem>>
    %3 = vector.broadcast %2 : f32 to vector<2x128xf32>
    %4 = arith.mulf %1, %3 : vector<2x128xf32>
    %c0_2 = arith.constant 0 : index
    %5 = memref.load %arg2[%c0_2] : memref<2xf32, #tpu.memory_space<smem>>
    %6 = vector.broadcast %5 : f32 to vector<2x128xf32>
    %7 = arith.addf %4, %6 : vector<2x128xf32>
    %8 = vector.extract_strided_slice %0 {offsets = [2, 0], sizes = [2, 128], strides = [1, 1]} : vector<8x128xf32> to vector<2x128xf32>
    %c1 = arith.constant 1 : index
    %9 = memref.load %arg1[%c1] : memref<4xf32, #tpu.memory_space<smem>>
    %10 = vector.broadcast %9 : f32 to vector<2x128xf32>
    %11 = arith.mulf %8, %10 : vector<2x128xf32>
    %12 = arith.addf %7, %11 : vector<2x128xf32>
    %13 = vector.extract_strided_slice %0 {offsets = [0, 0], sizes = [2, 128], strides = [1, 1]} : vector<8x128xf32> to vector<2x128xf32>
    %c2 = arith.constant 2 : index
    %14 = memref.load %arg1[%c2] : memref<4xf32, #tpu.memory_space<smem>>
    %15 = vector.broadcast %14 : f32 to vector<2x128xf32>
    %16 = arith.mulf %13, %15 : vector<2x128xf32>
    %c1_3 = arith.constant 1 : index
    %17 = memref.load %arg2[%c1_3] : memref<2xf32, #tpu.memory_space<smem>>
    %18 = vector.broadcast %17 : f32 to vector<2x128xf32>
    %19 = arith.addf %16, %18 : vector<2x128xf32>
    %20 = vector.extract_strided_slice %0 {offsets = [2, 0], sizes = [2, 128], strides = [1, 1]} : vector<8x128xf32> to vector<2x128xf32>
    %c3 = arith.constant 3 : index
    %21 = memref.load %arg1[%c3] : memref<4xf32, #tpu.memory_space<smem>>
    %22 = vector.broadcast %21 : f32 to vector<2x128xf32>
    %23 = arith.mulf %20, %22 : vector<2x128xf32>
    %24 = arith.addf %19, %23 : vector<2x128xf32>
    %25 = vector.extract_strided_slice %0 {offsets = [4, 0], sizes = [2, 128], strides = [1, 1]} : vector<8x128xf32> to vector<2x128xf32>
    %c0_4 = arith.constant 0 : index
    %26 = memref.load %arg1[%c0_4] : memref<4xf32, #tpu.memory_space<smem>>
    %27 = vector.broadcast %26 : f32 to vector<2x128xf32>
    %28 = arith.mulf %25, %27 : vector<2x128xf32>
    %c0_5 = arith.constant 0 : index
    %29 = memref.load %arg2[%c0_5] : memref<2xf32, #tpu.memory_space<smem>>
    %30 = vector.broadcast %29 : f32 to vector<2x128xf32>
    %31 = arith.addf %28, %30 : vector<2x128xf32>
    %32 = vector.extract_strided_slice %0 {offsets = [6, 0], sizes = [2, 128], strides = [1, 1]} : vector<8x128xf32> to vector<2x128xf32>
    %c1_6 = arith.constant 1 : index
    %33 = memref.load %arg1[%c1_6] : memref<4xf32, #tpu.memory_space<smem>>
    %34 = vector.broadcast %33 : f32 to vector<2x128xf32>
    %35 = arith.mulf %32, %34 : vector<2x128xf32>
    %36 = arith.addf %31, %35 : vector<2x128xf32>
    %37 = vector.extract_strided_slice %0 {offsets = [4, 0], sizes = [2, 128], strides = [1, 1]} : vector<8x128xf32> to vector<2x128xf32>
    %c2_7 = arith.constant 2 : index
    %38 = memref.load %arg1[%c2_7] : memref<4xf32, #tpu.memory_space<smem>>
    %39 = vector.broadcast %38 : f32 to vector<2x128xf32>
    %40 = arith.mulf %37, %39 : vector<2x128xf32>
    %c1_8 = arith.constant 1 : index
    %41 = memref.load %arg2[%c1_8] : memref<2xf32, #tpu.memory_space<smem>>
    %42 = vector.broadcast %41 : f32 to vector<2x128xf32>
    %43 = arith.addf %40, %42 : vector<2x128xf32>
    %44 = vector.extract_strided_slice %0 {offsets = [6, 0], sizes = [2, 128], strides = [1, 1]} : vector<8x128xf32> to vector<2x128xf32>
    %c3_9 = arith.constant 3 : index
    %45 = memref.load %arg1[%c3_9] : memref<4xf32, #tpu.memory_space<smem>>
    %46 = vector.broadcast %45 : f32 to vector<2x128xf32>
    %47 = arith.mulf %44, %46 : vector<2x128xf32>
    %48 = arith.addf %43, %47 : vector<2x128xf32>
    %49 = tpu.concatenate %12, %24, %36, %48 in 0 : vector<2x128xf32>, vector<2x128xf32>, vector<2x128xf32>, vector<2x128xf32> -> vector<8x128xf32>
    %c0_10 = arith.constant 0 : index
    %c0_11 = arith.constant 0 : index
    %50 = vector.load %arg3[%c0_10, %c0_11] : memref<8x128xf32, #tpu.memory_space<vmem>>, vector<8x128xf32>
    tpu.vector_store %arg3[%c0_10, %c0_11], %49 {strides = array<i32>} : memref<8x128xf32, #tpu.memory_space<vmem>>, vector<8x128xf32>,
    return
  }
}

</mosaic_0001>

<llo_original>
// kernel: tpu_custom_call.1
$region0: #{tpu_custom_call.1}
  #allocation0 [shape = 'u32[]', space=smem, size = 0x4, offset = 0x4, fixed_abs, tag = 'smem constant byte address 0x4 - core index']
  #allocation1 [shape = 'u32[72,128]{1,0:T(1,128)}', space=vmem, size = 0x9000, scoped, tag = 'internal scratch']
  %s0 = inlined_call_operand.hbm [shape: f32[8,128], index: 0, kind: input, shape index: {}]
  %s1 = inlined_call_operand.hbm [shape: f32[4], index: 1, kind: input, shape index: {}]
  %s2 = inlined_call_operand.vmem [shape: f32[2], index: 2, kind: input, shape index: {}]
  %s3 = inlined_call_operand.hbm [shape: f32[8,128], index: 3, kind: output, shape index: {}]
  %s4 = sld [smem:[#allocation0]]
  $region34: #{tpu_custom_call.1} parent=0
    _
  %s6 = ssub.s32 1, %s4
  %s7 = scalar_select 0, %s6, %s4
  $region1: #{tpu_custom_call.1} parent=0
    #allocation2 [shape = 'u8[4096]{0}', space=vmem, size = 0x1000, scoped, tag = 'input window, operand 0, single buffered']
    #allocation3 [shape = 's32[1]{0}', space=sflag, size = 0x4, scoped, tag = 'scoped memory for tpu_custom_call.1']
    #allocation4 [shape = 's32[1]{0}', space=sflag, size = 0x4, scoped, tag = 'scoped memory for tpu_custom_call.1']
    #allocation5 [shape = 's32[1]{0}', space=sflag, size = 0x4, scoped, tag = 'scoped memory for tpu_custom_call.1']
    #allocation6 [shape = 's32[1]{0}', space=sflag, size = 0x4, scoped, tag = 'scoped memory for tpu_custom_call.1']
    #allocation7 [shape = 'u8[512]{0}', space=smem, size = 0x200, scoped, tag = 'input window, operand 1, single buffered']
    #allocation8 [shape = 'u8[512]{0}', space=smem, size = 0x200, scoped, tag = 'input window, operand 2, single buffered']
    #allocation9 [shape = 'u8[4096]{0}', space=vmem, size = 0x1000, scoped, tag = 'output window, operand 0, single buffered']
    %8 = vsyncpa [#allocation3], 0
    %9 = vsyncpa [#allocation5], 0
    %10 = vsyncpa [#allocation6], 0
    %11 = vsyncpa [#allocation4], 0
    // Predicated region
    $region2: #{tpu_custom_call.1} parent=1 // pred_check
      _
    $region3: #{tpu_custom_call.1} parent=1 // pred_check_branch
      %13 = sbr.rel (0) target = $region5
    $region4: #{tpu_custom_call.1} parent=1 // pred_region
      %15 = vsyncadd [#allocation3], 0
      %s17 = sshll.u32 %s0, 4
      %s18 = int_to_ptr.hbm [resolvable:$true] %s17
      %s19 = sshll.u32 [#allocation2], 4
      %s20 = int_to_ptr.vmem [resolvable:$true] %s19
      %22 = dma.hbm_to_vmem [thread:$0]  %s18, 128, %s20, [#allocation3]
    $region5: #{tpu_custom_call.1} parent=1 // pred_fallthru
      _
    // Predicated region
    $region6: #{tpu_custom_call.1} parent=1 // pred_check
      _
    $region7: #{tpu_custom_call.1} parent=1 // pred_check_branch
      %24 = sbr.rel (0) target = $region9
    $region8: #{tpu_custom_call.1} parent=1 // pred_region
      %26 = vsyncadd [#allocation5], 0
      %s28 = sshll.u32 %s1, 4
      %s29 = int_to_ptr.hbm [resolvable:$true] %s28
      %31 = dma.hbm_to_smem %s29, 16, [#allocation7], [#allocation5]
    $region9: #{tpu_custom_call.1} parent=1 // pred_fallthru
      _
    // Predicated region
    $region10: #{tpu_custom_call.1} parent=1 // pred_check
      _
    $region11: #{tpu_custom_call.1} parent=1 // pred_check_branch
      %33 = sbr.rel (0) target = $region13
    $region12: #{tpu_custom_call.1} parent=1 // pred_region
      %35 = vsyncadd [#allocation6], 0
      %s37 = sshll.u32 %s2, 4
      %s38 = int_to_ptr.vmem [resolvable:$true] %s37
      %40 = dma.vmem_to_smem %s38, 16, [#allocation8], [#allocation6]
    $region13: #{tpu_custom_call.1} parent=1 // pred_fallthru
      _
    // Predicated region
    $region14: #{tpu_custom_call.1} parent=1 // pred_check
      _
    $region15: #{tpu_custom_call.1} parent=1 // pred_check_branch
      %42 = sbr.rel (0) target = $region17
    $region16: #{tpu_custom_call.1} parent=1 // pred_region
      %44 = dma.done [#allocation3], 128
    $region17: #{tpu_custom_call.1} parent=1 // pred_fallthru
      _
    // Predicated region
    $region18: #{tpu_custom_call.1} parent=1 // pred_check
      _
    $region19: #{tpu_custom_call.1} parent=1 // pred_check_branch
      %46 = sbr.rel (0) target = $region21
    $region20: #{tpu_custom_call.1} parent=1 // pred_region
      %48 = dma.done [#allocation5], 16
    $region21: #{tpu_custom_call.1} parent=1 // pred_fallthru
      _
    // Predicated region
    $region22: #{tpu_custom_call.1} parent=1 // pred_check
      _
    $region23: #{tpu_custom_call.1} parent=1 // pred_check_branch
      %50 = sbr.rel (0) target = $region25
    $region24: #{tpu_custom_call.1} parent=1 // pred_region
      %52 = dma.done [#allocation6], 16
    $region25: #{tpu_custom_call.1} parent=1 // pred_fallthru
      _
    %53 = sfence
    %v54 = vld [vmem:[#allocation2] sm:$0xff]
    %s55 = sld [smem:[#allocation7]]
    %v56 = vstv %s55
    %v57 = vmul.f32 %v54, %v56
    %s58 = sld [smem:[#allocation8]]
    %v59 = vstv %s58
    %v60 = vadd.f32 %v57, %v59
    %s61 = sld [smem:[#allocation7 + $0x1]]
    %v62 = vstv %s61
    %v63 = vmul.f32 %v54, %v62
    %v65 = vrot.slane %v63, 2
    %v67 = vadd.f32 %v60, %v65
    %s68 = sld [smem:[#allocation7 + $0x2]]
    %v69 = vstv %s68
    %v70 = vmul.f32 %v54, %v69
    %s71 = sld [smem:[#allocation8 + $0x1]]
    %v72 = vstv %s71
    %v73 = vadd.f32 %v70, %v72
    %s74 = sld [smem:[#allocation7 + $0x3]]
    %v75 = vstv %s74
    %v76 = vmul.f32 %v54, %v75
    %v78 = vrot.slane %v76, 2
    %v80 = vadd.f32 %v73, %v78
    %v82 = vrot.slane %v80, 6
    %vm84 = vcmask 1041408
    %v85 = vsel %vm84, %v67, %v82
    %vm86 = vcmask 1043456
    %v87 = vsel %vm86, %v85, %v67
    %vm88 = vcmask 1045504
    %v89 = vsel %vm88, %v87, %v82
    %90 = vst [vmem:[#allocation9] sm:$0xff] %v89
    // Predicated region
    $region26: #{tpu_custom_call.1} parent=1 // pred_check
      _
    $region27: #{tpu_custom_call.1} parent=1 // pred_check_branch
      %92 = sbr.rel (0) target = $region29
    $region28: #{tpu_custom_call.1} parent=1 // pred_region
      %94 = vsyncadd [#allocation4], 0
      %s96 = sshll.u32 [#allocation9], 4
      %s97 = int_to_ptr.vmem [resolvable:$true] %s96
      %s98 = sshll.u32 %s3, 4
      %s99 = int_to_ptr.hbm [resolvable:$true] %s98
      %101 = dma.vmem_to_hbm [thread:$0]  %s97, 128, %s99, [#allocation4]
    $region29: #{tpu_custom_call.1} parent=1 // pred_fallthru
      _
    // Predicated region
    $region30: #{tpu_custom_call.1} parent=1 // pred_check
      _
    $region31: #{tpu_custom_call.1} parent=1 // pred_check_branch
      %103 = sbr.rel (0) target = $region33
    $region32: #{tpu_custom_call.1} parent=1 // pred_region
      %105 = dma.done [#allocation4], 128
    $region33: #{tpu_custom_call.1} parent=1 // pred_fallthru
      _
    %106 = vsyncpa [#allocation3], 1
    %107 = vsyncpa [#allocation4], 1
    %108 = vsyncpa [#allocation5], 1
    %109 = vsyncpa [#allocation6], 1

</llo_original>
